<compile_context>
chip_gen: v5e
topology: v5e:2x2
jax: 0.10.0
libtpu: 0.0.40
codegen_flags: <defaults>
</compile_context>

<pallas_src>
import functools

import jax
import jax.numpy as jnp
from jax.experimental import pallas as pl
from jax.experimental.pallas import tpu as pltpu

LRELU_SLOPE = 0.1
K = 5                 # conv kernel size
PAD = 2               # conv "same" padding
HALO = 2 * PAD        # rows needed around a tile by conv2(conv1(x))
TAIL = 16             # tail-halo rows per tile: >= 2*HALO and one full packed
                      # (16,128) bf16 tile, so the halo DMA is never sub-tile

assert HALO == K - 1, "residual folding below relies on HALO == K - 1"
assert TAIL >= 2 * HALO and TAIL % 16 == 0


def _round_up(v, m):
    return ((v + m - 1) // m) * m


def resblock_kernel(a_ref, b_ref, w1_ref, b1_ref, w2_ref, b2_ref, o_ref, *,
                    t_total):
    """One (batch, time-tile) grid step.

    a_ref : (1, tile_t, Cp) bf16   padded-input rows [t*tile_t, +tile_t)
    b_ref : (1, TAIL,  Cp)  bf16   padded-input rows [(t+1)*tile_t, +TAIL)
    w1_ref/w2_ref : (Cp, K*Cp) bf16  tap k occupies columns [k*Cp, (k+1)*Cp)
    b1_ref/b2_ref : (1, Cp) f32
    o_ref : (1, tile_t, Cp) bf16

    With t0 = program_id(1)*tile_t, window row m <-> original time t0+m-HALO
    (the padded input has HALO zero rows in front).  Only rows [0, tile_t) are
    stored; rows >= tile_t of the intermediates may hold wrapped-roll garbage.
    L = tile_t + TAIL with TAIL >= 2*HALO = 2*(K-1)/1 guarantees every row that
    feeds a stored output is never a wrapped row.
    """
    tile_t = o_ref.shape[1]
    cp = o_ref.shape[2]
    L = tile_t + TAIL

    # Halo window, assembled and kept in bf16 (no f32 copy of the window).
    xw = jnp.concatenate([a_ref[0], b_ref[0]], axis=0)           # (L, Cp)

    # ---- conv1: one fused MXU call; taps stacked along the RHS output dim --
    # h[m] (= conv1 output at time t0 - PAD + m) = sum_k xw[m+k] @ W1[k]
    #                                            = sum_k roll(P1[:,k], -k)[m]
    # Rolling the f32 *products* keeps the MXU operand un-shifted; the shifts
    # ride on the (otherwise idle) XLU, and the product slices are 128-lane
    # aligned views of a single (L, K*Cp) dot result.
    p1 = jnp.dot(xw, w1_ref[...], preferred_element_type=jnp.float32)
    acc1 = p1[:, 0:cp] + b1_ref[...]
    for k in range(1, K):
        acc1 = acc1 + pltpu.roll(p1[:, k * cp:(k + 1) * cp], L - k, axis=0)

    # LeakyReLU(0.1) in f32.
    h = jnp.where(acc1 > 0, acc1, LRELU_SLOPE * acc1)

    # conv2 sees zero padding outside [0, T): zero the h rows whose global
    # time position is out of range (also handles the tile boundaries).
    t0 = pl.program_id(1) * tile_t
    pos = (t0 - PAD) + jax.lax.broadcasted_iota(jnp.int32, (L, 1), 0)
    h = jnp.where(jnp.logical_and(pos >= 0, pos < t_total), h, 0.0)

    # ---- conv2 + residual ---------------------------------------------------
    # acc2[m] = conv2 output at original time t0 + m.  The residual x(t0 + m)
    # is window row m + HALO; since HALO == K-1 it needs exactly the same row
    # shift as the last tap, so it is folded into that tap's f32 product
    # before the roll (bf16 residual; see note in resblock_pallas docstring).
    hb = h.astype(jnp.bfloat16)
    p2 = jnp.dot(hb, w2_ref[...], preferred_element_type=jnp.float32)
    acc2 = p2[:, 0:cp] + b2_ref[...]
    for k in range(1, K - 1):
        acc2 = acc2 + pltpu.roll(p2[:, k * cp:(k + 1) * cp], L - k, axis=0)
    last = p2[:, (K - 1) * cp:K * cp] + xw                       # f32 + bf16
    acc2 = acc2 + pltpu.roll(last, L - (K - 1), axis=0)

    # Store only the tile_t valid rows, lane-dense bf16.
    o_ref[0] = acc2[0:tile_t, :].astype(o_ref.dtype)


def resblock_pallas(x, w1, b1, w2, b2, *, tile_t=None):
    """x: (B, C, T) float32; weights in PyTorch Conv1d layout (Cout, Cin, K).

    Note: matmul operands, the skip connection and the kernel output are bf16
    (f32 accumulation), so the result is not bit-equal to the f32 module.
    """
    B, C, T = x.shape
    assert w1.shape == (C, C, K) and w2.shape == (C, C, K)    # Cin == Cout

    # Lane-dense channel layout: pad C to a multiple of 128.  Padded input
    # channels / weight rows / biases are zero, so padded output channels are
    # exactly zero and are sliced off below.
    # TODO(synk): for tiny C (e.g. 4) a time-in-lanes NCT/VPU kernel (taps as
    # lane rolls, MACs on the VPU) would avoid the 128/C padding overhead.
    Cp = _round_up(C, 128)

    # --- generation-aware VMEM budget and time-tile size ---------------------
    try:
        vmem_cap = int(pltpu.get_tpu_info().vmem_capacity_bytes)
    except Exception:                                     # conservative default
        vmem_cap = 64 * 1024 * 1024
    # ~50% scoped on small-VMEM chips (v7x: 64 MiB/TC), ~75% on v5e/v6e.
    frac = 0.5 if vmem_cap <= 64 * 1024 * 1024 else 0.75
    vmem_limit = int(min(max(frac * vmem_cap, 16 * 1024 * 1024),
                         96 * 1024 * 1024))

    # Live working set ~= double-buffered bf16 in/out blocks + bf16 window +
    # (L, K*Cp) f32 tap-product slabs + f32 acc/h  ~= 96 B per (row, channel),
    # plus the resident stacked weights.
    weight_bytes = 2 * 2 * (Cp * K * Cp * 2)              # two stacked Ws, dbuf
    budget = max(vmem_limit - weight_bytes - (4 << 20), vmem_limit // 4)
    tile_cap = max(16, (budget // (96 * Cp)) // 16 * 16)
    if tile_t is None:
        tile_t = (2 << 20) // (2 * Cp)                    # ~2 MiB bf16 / block
    tile_t = max(16, _round_up(min(tile_t, tile_cap, 4096, _round_up(T, 16)), 16))
    assert tile_t % TAIL == 0
    n_t = pl.cdiv(T, tile_t)
    t_grid = n_t * tile_t

    # NCT -> NTC, cast to bf16, pad channels to Cp and time so that every tile
    # has HALO zero rows in front and a full TAIL-row tail window available at
    # a 16-row-aligned offset.
    # TODO(synk): keep activations in (N, T, Cp) bf16 between layers so this
    # transpose/pad/cast (a full HBM round trip) fuses with the producer.
    xt = jnp.transpose(x, (0, 2, 1)).astype(jnp.bfloat16)
    xp = jnp.pad(xt, ((0, 0), (HALO, t_grid + TAIL - HALO - T), (0, Cp - C)))

    # (Cout, Cin, K) -> (Cin, K*Cout): tap k occupies output columns
    # [k*Cp, (k+1)*Cp) so the kernel's product slices stay 128-lane aligned.
    def _stack_taps(w):
        wp = jnp.zeros((Cp, Cp, K), jnp.float32).at[:C, :C, :].set(
            w.astype(jnp.float32))
        return jnp.transpose(wp, (1, 2, 0)).reshape(Cp, K * Cp).astype(
            jnp.bfloat16)

    w1s, w2s = _stack_taps(w1), _stack_taps(w2)
    b1r = jnp.zeros((1, Cp), jnp.float32).at[0, :C].set(b1.astype(jnp.float32))
    b2r = jnp.zeros((1, Cp), jnp.float32).at[0, :C].set(b2.astype(jnp.float32))

    halo_blocks = tile_t // TAIL          # TAIL-row blocks per tile

    grid_spec = pltpu.PrefetchScalarGridSpec(
        num_scalar_prefetch=0,
        grid=(B, n_t),
        in_specs=[
            # main tile: padded-input rows [t*tile_t, (t+1)*tile_t)
            pl.BlockSpec((1, tile_t, Cp), lambda b, t: (b, t, 0)),
            # tail halo: rows [(t+1)*tile_t, (t+1)*tile_t + TAIL)
            pl.BlockSpec((1, TAIL, Cp),
                         lambda b, t: (b, (t + 1) * halo_blocks, 0)),
            pl.BlockSpec((Cp, K * Cp), lambda b, t: (0, 0)),   # w1 (resident)
            pl.BlockSpec((1, Cp), lambda b, t: (0, 0)),        # b1
            pl.BlockSpec((Cp, K * Cp), lambda b, t: (0, 0)),   # w2 (resident)
            pl.BlockSpec((1, Cp), lambda b, t: (0, 0)),        # b2
        ],
        out_specs=pl.BlockSpec((1, tile_t, Cp), lambda b, t: (b, t, 0)),
    )

    # Both grid axes are independent -> "parallel" (megacore split on v7x;
    # no-op on single-TC v5e/v6e).
    out_ntc = pl.pallas_call(
        functools.partial(resblock_kernel, t_total=T),
        out_shape=jax.ShapeDtypeStruct((B, t_grid, Cp), jnp.bfloat16),
        grid_spec=grid_spec,
        compiler_params=pltpu.CompilerParams(
            dimension_semantics=("parallel", "parallel"),
            vmem_limit_bytes=vmem_limit),
    )(xp, xp, w1s, b1r, w2s, b2r)

    # Drop time/channel padding, back to (B, C, T).
    return jnp.transpose(out_ntc[:, :T, :C], (0, 2, 1)).astype(x.dtype)


def resblock_ref(x, w1, b1, w2, b2):
    """Pure-JAX f32 reference matching torch semantics (NCT / OIT convs)."""
    dn = ("NCH", "OIH", "NCH")
    prec = jax.lax.Precision.HIGHEST
    y = jax.lax.conv_general_dilated(x, w1, (1,), ((PAD, PAD),),
                                     dimension_numbers=dn,
                                     precision=prec) + b1[None, :, None]
    y = jnp.where(y > 0, y, LRELU_SLOPE * y)
    y = jax.lax.conv_general_dilated(y, w2, (1,), ((PAD, PAD),),
                                     dimension_numbers=dn,
                                     precision=prec) + b2[None, :, None]
    return y + x


if __name__ == "__main__":
    key = jax.random.PRNGKey(0)

    # ---- test 1: module-sized demo shapes (single time tile) ---------------
    B, C, T = 2, 4, 16
    kx, k1, k2, k3, k4, kx2 = jax.random.split(key, 6)
    x = jax.random.normal(kx, (B, C, T), dtype=jnp.float32)
    w1 = 0.1 * jax.random.normal(k1, (C, C, K), dtype=jnp.float32)
    b1 = 0.1 * jax.random.normal(k2, (C,), dtype=jnp.float32)
    w2 = 0.1 * jax.random.normal(k3, (C, C, K), dtype=jnp.float32)
    b2 = 0.1 * jax.random.normal(k4, (C,), dtype=jnp.float32)

    out = jax.block_until_ready(resblock_pallas(x, w1, b1, w2, b2))
    ref = resblock_ref(x, w1, b1, w2, b2)
    assert out.shape == (B, C, T)
    # bf16 matmul inputs / residual / output (f32 accumulation) -> relaxed tol.
    assert jnp.allclose(out, ref, atol=5e-2, rtol=5e-2), \
        float(jnp.max(jnp.abs(out - ref)))

    # ---- test 2: exercise the multi-tile / non-divisible-T path ------------
    T2 = 50
    x2 = jax.random.normal(kx2, (B, C, T2), dtype=jnp.float32)
    out2 = jax.block_until_ready(
        resblock_pallas(x2, w1, b1, w2, b2, tile_t=16))
    ref2 = resblock_ref(x2, w1, b1, w2, b2)
    assert out2.shape == (B, C, T2)
    assert jnp.allclose(out2, ref2, atol=5e-2, rtol=5e-2), \
        float(jnp.max(jnp.abs(out2 - ref2)))

    print("KERNEL_OK")
</pallas_src>

<mosaic_0001>
module attributes {stable_mosaic.version = 11 : i64} {
  func.func @resblock_kernel(%arg0: i32, %arg1: i32, %arg2: memref<1x16x128xbf16, #tpu.memory_space<vmem>>, %arg3: memref<1x16x128xbf16, #tpu.memory_space<vmem>>, %arg4: memref<128x640xbf16, #tpu.memory_space<vmem>>, %arg5: memref<1x128xf32, #tpu.memory_space<vmem>>, %arg6: memref<128x640xbf16, #tpu.memory_space<vmem>>, %arg7: memref<1x128xf32, #tpu.memory_space<vmem>>, %arg8: memref<1x16x128xbf16, #tpu.memory_space<vmem>>) attributes {dimension_semantics = [#tpu.dimension_semantics<parallel>, #tpu.dimension_semantics<parallel>], iteration_bounds = array<i64: 2, 1>, scalar_prefetch = 0 : i64, scratch_operands = 0 : i64, tpu.core_type = #tpu.core_type<tc>, window_params = [{transform_indices = @transform_0, window_bounds = array<i64: 1, 16, 128>}, {transform_indices = @transform_1, window_bounds = array<i64: 1, 16, 128>}, {pipeline_mode = #tpu.pipeline_mode<synchronous>, transform_indices = @transform_2, window_bounds = array<i64: 128, 640>}, {pipeline_mode = #tpu.pipeline_mode<synchronous>, transform_indices = @transform_3, window_bounds = array<i64: 1, 128>}, {pipeline_mode = #tpu.pipeline_mode<synchronous>, transform_indices = @transform_4, window_bounds = array<i64: 128, 640>}, {pipeline_mode = #tpu.pipeline_mode<synchronous>, transform_indices = @transform_5, window_bounds = array<i64: 1, 128>}, {transform_indices = @transform_6, window_bounds = array<i64: 1, 16, 128>}]} {
    %c0 = arith.constant 0 : index
    %c0_0 = arith.constant 0 : index
    %c0_1 = arith.constant 0 : index
    %0 = vector.load %arg2[%c0, %c0_0, %c0_1] : memref<1x16x128xbf16, #tpu.memory_space<vmem>>, vector<1x16x128xbf16>
    %1 = vector.shape_cast %0 : vector<1x16x128xbf16> to vector<16x128xbf16>
    %c0_2 = arith.constant 0 : index
    %c0_3 = arith.constant 0 : index
    %c0_4 = arith.constant 0 : index
    %2 = vector.load %arg3[%c0_2, %c0_3, %c0_4] : memref<1x16x128xbf16, #tpu.memory_space<vmem>>, vector<1x16x128xbf16>
    %3 = vector.shape_cast %2 : vector<1x16x128xbf16> to vector<16x128xbf16>
    %4 = tpu.concatenate %1, %3 in 0 : vector<16x128xbf16>, vector<16x128xbf16> -> vector<32x128xbf16>
    %c0_5 = arith.constant 0 : index
    %c0_6 = arith.constant 0 : index
    %5 = vector.load %arg4[%c0_5, %c0_6] : memref<128x640xbf16, #tpu.memory_space<vmem>>, vector<128x640xbf16>
    %cst = arith.constant dense<0.000000e+00> : vector<32x640xf32>
    %6 = tpu.matmul %4, %5, %cst {dimension_numbers = #tpu.dot_dimension_numbers<[1], [0], [0], [1], [0, 0, 1, 1], [], []>} : vector<32x128xbf16>, vector<128x640xbf16>, vector<32x640xf32> -> vector<32x640xf32>
    %7 = vector.extract_strided_slice %6 {offsets = [0, 0], sizes = [32, 128], strides = [1, 1]} : vector<32x640xf32> to vector<32x128xf32>
    %c0_7 = arith.constant 0 : index
    %c0_8 = arith.constant 0 : index
    %8 = vector.load %arg5[%c0_7, %c0_8] : memref<1x128xf32, #tpu.memory_space<vmem>>, vector<1x128xf32>
    %9 = vector.broadcast %8 : vector<1x128xf32> to vector<32x128xf32>
    %10 = arith.addf %7, %9 : vector<32x128xf32>
    %11 = vector.extract_strided_slice %6 {offsets = [0, 128], sizes = [32, 128], strides = [1, 1]} : vector<32x640xf32> to vector<32x128xf32>
    %c31_i32 = arith.constant 31 : i32
    %12 = tpu.dynamic_rotate %11 by %c31_i32 dim 0 : vector<32x128xf32>, i32 -> vector<32x128xf32>
    %13 = arith.addf %10, %12 : vector<32x128xf32>
    %14 = vector.extract_strided_slice %6 {offsets = [0, 256], sizes = [32, 128], strides = [1, 1]} : vector<32x640xf32> to vector<32x128xf32>
    %c30_i32 = arith.constant 30 : i32
    %15 = tpu.dynamic_rotate %14 by %c30_i32 dim 0 : vector<32x128xf32>, i32 -> vector<32x128xf32>
    %16 = arith.addf %13, %15 : vector<32x128xf32>
    %17 = vector.extract_strided_slice %6 {offsets = [0, 384], sizes = [32, 128], strides = [1, 1]} : vector<32x640xf32> to vector<32x128xf32>
    %c29_i32 = arith.constant 29 : i32
    %18 = tpu.dynamic_rotate %17 by %c29_i32 dim 0 : vector<32x128xf32>, i32 -> vector<32x128xf32>
    %19 = arith.addf %16, %18 : vector<32x128xf32>
    %20 = vector.extract_strided_slice %6 {offsets = [0, 512], sizes = [32, 128], strides = [1, 1]} : vector<32x640xf32> to vector<32x128xf32>
    %c28_i32 = arith.constant 28 : i32
    %21 = tpu.dynamic_rotate %20 by %c28_i32 dim 0 : vector<32x128xf32>, i32 -> vector<32x128xf32>
    %22 = arith.addf %19, %21 : vector<32x128xf32>
    %cst_9 = arith.constant 0.000000e+00 : f32
    %23 = vector.broadcast %cst_9 : f32 to vector<32x128xf32>
    %24 = arith.cmpf ogt, %22, %23 : vector<32x128xf32>
    %cst_10 = arith.constant 1.000000e-01 : f32
    %25 = vector.broadcast %cst_10 : f32 to vector<32x128xf32>
    %26 = arith.mulf %25, %22 : vector<32x128xf32>
    %27 = arith.select %24, %22, %26 : vector<32x128xi1>, vector<32x128xf32>
    %c16_i32 = arith.constant 16 : i32
    %28 = arith.muli %arg1, %c16_i32 : i32
    %c2_i32 = arith.constant 2 : i32
    %29 = arith.subi %28, %c2_i32 : i32
    %30 = tpu.iota {dimensions = array<i32: 0>} : vector<32x1xi32>
    %31 = vector.broadcast %29 : i32 to vector<32x1xi32>
    %32 = arith.addi %31, %30 : vector<32x1xi32>
    %c0_i32 = arith.constant 0 : i32
    %33 = vector.broadcast %c0_i32 : i32 to vector<32x1xi32>
    %34 = arith.cmpi sge, %32, %33 : vector<32x1xi32>
    %c16_i32_11 = arith.constant 16 : i32
    %35 = vector.broadcast %c16_i32_11 : i32 to vector<32x1xi32>
    %36 = arith.cmpi slt, %32, %35 : vector<32x1xi32>
    %37 = arith.andi %34, %36 : vector<32x1xi1>
    %cst_12 = arith.constant 0.000000e+00 : f32
    %38 = vector.shape_cast %37 : vector<32x1xi1> to vector<32x1xi1>
    %39 = vector.broadcast %38 : vector<32x1xi1> to vector<32x128xi1>
    %40 = vector.broadcast %cst_12 : f32 to vector<32x128xf32>
    %41 = arith.select %39, %27, %40 : vector<32x128xi1>, vector<32x128xf32>
    %42 = arith.truncf %41 : vector<32x128xf32> to vector<32x128xbf16>
    %c0_13 = arith.constant 0 : index
    %c0_14 = arith.constant 0 : index
    %43 = vector.load %arg6[%c0_13, %c0_14] : memref<128x640xbf16, #tpu.memory_space<vmem>>, vector<128x640xbf16>
    %cst_15 = arith.constant dense<0.000000e+00> : vector<32x640xf32>
    %44 = tpu.matmul %42, %43, %cst_15 {dimension_numbers = #tpu.dot_dimension_numbers<[1], [0], [0], [1], [0, 0, 1, 1], [], []>} : vector<32x128xbf16>, vector<128x640xbf16>, vector<32x640xf32> -> vector<32x640xf32>
    %45 = vector.extract_strided_slice %44 {offsets = [0, 0], sizes = [32, 128], strides = [1, 1]} : vector<32x640xf32> to vector<32x128xf32>
    %c0_16 = arith.constant 0 : index
    %c0_17 = arith.constant 0 : index
    %46 = vector.load %arg7[%c0_16, %c0_17] : memref<1x128xf32, #tpu.memory_space<vmem>>, vector<1x128xf32>
    %47 = vector.broadcast %46 : vector<1x128xf32> to vector<32x128xf32>
    %48 = arith.addf %45, %47 : vector<32x128xf32>
    %49 = vector.extract_strided_slice %44 {offsets = [0, 128], sizes = [32, 128], strides = [1, 1]} : vector<32x640xf32> to vector<32x128xf32>
    %c31_i32_18 = arith.constant 31 : i32
    %50 = tpu.dynamic_rotate %49 by %c31_i32_18 dim 0 : vector<32x128xf32>, i32 -> vector<32x128xf32>
    %51 = arith.addf %48, %50 : vector<32x128xf32>
    %52 = vector.extract_strided_slice %44 {offsets = [0, 256], sizes = [32, 128], strides = [1, 1]} : vector<32x640xf32> to vector<32x128xf32>
    %c30_i32_19 = arith.constant 30 : i32
    %53 = tpu.dynamic_rotate %52 by %c30_i32_19 dim 0 : vector<32x128xf32>, i32 -> vector<32x128xf32>
    %54 = arith.addf %51, %53 : vector<32x128xf32>
    %55 = vector.extract_strided_slice %44 {offsets = [0, 384], sizes = [32, 128], strides = [1, 1]} : vector<32x640xf32> to vector<32x128xf32>
    %c29_i32_20 = arith.constant 29 : i32
    %56 = tpu.dynamic_rotate %55 by %c29_i32_20 dim 0 : vector<32x128xf32>, i32 -> vector<32x128xf32>
    %57 = arith.addf %54, %56 : vector<32x128xf32>
    %58 = vector.extract_strided_slice %44 {offsets = [0, 512], sizes = [32, 128], strides = [1, 1]} : vector<32x640xf32> to vector<32x128xf32>
    %59 = arith.extf %4 : vector<32x128xbf16> to vector<32x128xf32>
    %60 = arith.addf %58, %59 : vector<32x128xf32>
    %c28_i32_21 = arith.constant 28 : i32
    %61 = tpu.dynamic_rotate %60 by %c28_i32_21 dim 0 : vector<32x128xf32>, i32 -> vector<32x128xf32>
    %62 = arith.addf %57, %61 : vector<32x128xf32>
    %63 = vector.extract_strided_slice %62 {offsets = [0, 0], sizes = [16, 128], strides = [1, 1]} : vector<32x128xf32> to vector<16x128xf32>
    %64 = arith.truncf %63 : vector<16x128xf32> to vector<16x128xbf16>
    %c0_22 = arith.constant 0 : index
    %c0_23 = arith.constant 0 : index
    %c0_24 = arith.constant 0 : index
    %65 = vector.load %arg8[%c0_22, %c0_23, %c0_24] : memref<1x16x128xbf16, #tpu.memory_space<vmem>>, vector<1x16x128xbf16>
    %66 = vector.shape_cast %65 : vector<1x16x128xbf16> to vector<16x128xbf16>
    %67 = vector.shape_cast %64 : vector<16x128xbf16> to vector<1x16x128xbf16>
    tpu.vector_store %arg8[%c0_22, %c0_23, %c0_24], %67 {strides = array<i32>} : memref<1x16x128xbf16, #tpu.memory_space<vmem>>, vector<1x16x128xbf16>,
    return
  }
  func.func @transform_0(%arg0: i32, %arg1: i32) -> (i32, i32, i32) {
    %c0_i32 = arith.constant 0 : i32
    %c0_i32_0 = arith.constant 0 : i32
    return %arg0, %arg1, %c0_i32 : i32, i32, i32
  }
  func.func @transform_1(%arg0: i32, %arg1: i32) -> (i32, i32, i32) {
    %c1_i32 = arith.constant 1 : i32
    %0 = arith.addi %arg1, %c1_i32 : i32
    %c1_i32_0 = arith.constant 1 : i32
    %1 = arith.muli %0, %c1_i32_0 : i32
    %c0_i32 = arith.constant 0 : i32
    %c0_i32_1 = arith.constant 0 : i32
    return %arg0, %1, %c0_i32 : i32, i32, i32
  }
  func.func @transform_2(%arg0: i32, %arg1: i32) -> (i32, i32) {
    %c0_i32 = arith.constant 0 : i32
    %c0_i32_0 = arith.constant 0 : i32
    %c0_i32_1 = arith.constant 0 : i32
    return %c0_i32, %c0_i32_0 : i32, i32
  }
  func.func @transform_3(%arg0: i32, %arg1: i32) -> (i32, i32) {
    %c0_i32 = arith.constant 0 : i32
    %c0_i32_0 = arith.constant 0 : i32
    %c0_i32_1 = arith.constant 0 : i32
    return %c0_i32, %c0_i32_0 : i32, i32
  }
  func.func @transform_4(%arg0: i32, %arg1: i32) -> (i32, i32) {
    %c0_i32 = arith.constant 0 : i32
    %c0_i32_0 = arith.constant 0 : i32
    %c0_i32_1 = arith.constant 0 : i32
    return %c0_i32, %c0_i32_0 : i32, i32
  }
  func.func @transform_5(%arg0: i32, %arg1: i32) -> (i32, i32) {
    %c0_i32 = arith.constant 0 : i32
    %c0_i32_0 = arith.constant 0 : i32
    %c0_i32_1 = arith.constant 0 : i32
    return %c0_i32, %c0_i32_0 : i32, i32
  }
  func.func @transform_6(%arg0: i32, %arg1: i32) -> (i32, i32, i32) {
    %c0_i32 = arith.constant 0 : i32
    %c0_i32_0 = arith.constant 0 : i32
    return %arg0, %arg1, %c0_i32 : i32, i32, i32
  }
}

</mosaic_0001>

<llo_original>
// kernel: tpu_custom_call.1
$region0: #{tpu_custom_call.1}
  #allocation0 [shape = 'u32[]', space=smem, size = 0x4, offset = 0x4, fixed_abs, tag = 'smem constant byte address 0x4 - core index']
  #allocation1 [shape = 'u32[72,128]{1,0:T(1,128)}', space=vmem, size = 0x9000, scoped, tag = 'internal scratch']
  %s0 = inlined_call_operand.hbm [shape: bf16[2,32,128], index: 0, kind: input, shape index: {}]
  %s1 = inlined_call_operand.hbm [shape: bf16[2,32,128], index: 1, kind: input, shape index: {}]
  %s2 = inlined_call_operand.hbm [shape: bf16[128,640], index: 2, kind: input, shape index: {}]
  %s3 = inlined_call_operand.vmem [shape: f32[1,128], index: 3, kind: input, shape index: {}]
  %s4 = inlined_call_operand.hbm [shape: bf16[128,640], index: 4, kind: input, shape index: {}]
  %s5 = inlined_call_operand.vmem [shape: f32[1,128], index: 5, kind: input, shape index: {}]
  %s6 = inlined_call_operand.hbm [shape: bf16[2,16,128], index: 6, kind: output, shape index: {}]
  %s7 = sld [smem:[#allocation0]]
  $region73: #{tpu_custom_call.1} parent=0
    _
  %s9 = ssub.s32 1, %s7
  %s10 = scalar_select 0, %s9, %s7
  $region1: #{tpu_custom_call.1} parent=0
    #allocation2 [shape = 'u8[8192]{0}', space=vmem, size = 0x2000, scoped, tag = 'input window, operand 0']
    #allocation3 [shape = 's32[2]{0}', space=sflag, size = 0x8, scoped, tag = 'scoped memory for tpu_custom_call.1']
    #allocation4 [shape = 's32[2]{0}', space=sflag, size = 0x8, scoped, tag = 'scoped memory for tpu_custom_call.1']
    #allocation5 [shape = 'u8[8192]{0}', space=vmem, size = 0x2000, scoped, tag = 'input window, operand 1']
    #allocation6 [shape = 's32[2]{0}', space=sflag, size = 0x8, scoped, tag = 'scoped memory for tpu_custom_call.1']
    #allocation7 [shape = 'u8[163840]{0}', space=vmem, size = 0x28000, scoped, tag = 'input window, operand 2, single buffered']
    #allocation8 [shape = 'u8[163840]{0}', space=vmem, size = 0x28000, scoped, tag = 'input window, operand 4, single buffered']
    #allocation9 [shape = 's32[1]{0}', space=sflag, size = 0x4, scoped, tag = 'scoped memory for tpu_custom_call.1']
    #allocation10 [shape = 'u8[8192]{0}', space=vmem, size = 0x2000, scoped, tag = 'output window, operand 0']
    %11 = vsyncpa [#allocation3], 0
    %s12 = scalar_lea.sflag [#allocation3], 1
    %13 = vsyncpa %s12, 0
    %14 = vsyncpa [#allocation6], 0
    %s15 = scalar_lea.sflag [#allocation6], 1
    %16 = vsyncpa %s15, 0
    %17 = vsyncpa [#allocation9], 0
    %18 = vsyncpa [#allocation4], 0
    %s19 = scalar_lea.sflag [#allocation4], 1
    %20 = vsyncpa %s19, 0
    loop: start=0, step=1, limit=4
    $region2: #{tpu_custom_call.1} parent=1 // loop_pre_header
      _
    $region3: #{tpu_custom_call.1} parent=1 // loop_header
      %s22 = sphi 0, %s26
      %p23 = scmp.ge.s32.totalorder %s22, 4
      %s29 = sphi 0, %s41
      %s30 = sphi 0, %s37
      %s31 = sphi 0, %s29
      %s32 = sphi 0, %s30
      %s33 = sphi 0, %s31
      %s34 = sphi 0, %s32
      %s46 = sphi 0, %s48
      %s49 = sphi 0, %s46
      %s50 = sphi 0, %s49
      %s66 = sphi 0, %s50
      %s76 = sphi 0, %s78
      %s79 = sphi 0, %s76
      %s80 = sphi 0, %s79
      %s96 = sphi 0, %s80
      %s100 = sphi 0, %s100
      %s102 = sphi 0, %s100
      %s103 = sphi 0, %s102
      %s117 = sphi 0, %s103
      %s121 = sphi 0, %s121
      %s123 = sphi 0, %s121
      %s124 = sphi 0, %s123
      %s138 = sphi 0, %s124
      %s142 = sphi 0, %s142
      %s144 = sphi 0, %s142
      %s145 = sphi 0, %s144
      %s159 = sphi 0, %s145
      %s163 = sphi 0, %s163
      %s165 = sphi 0, %s163
      %s166 = sphi 0, %s165
      %s180 = sphi 0, %s166
      %s188 = sphi 0, %s190
      %s191 = sphi 0, %s188
      %s192 = sphi 0, %s191
      %s208 = sphi 0, %s192
    $region4: #{tpu_custom_call.1} parent=1 // loop_header_branch
      %25 = sbr.rel (%p23) target = $region8
    $region5: #{tpu_custom_call.1} parent=1 // loop_body
      %s27 = ssub.s32 %s22, 1
      %s28 = ssub.s32 %s22, 2
      %s35 = sadd.s32 1, %s30
      %p36 = scmp.ge.s32.totalorder %s35, 1
      %s37 = scalar_select %p36, 0, %s35
      %s38 = sadd.s32 1, %s29
      %s39 = scalar_select %p36, %s38, %s29
      %p40 = scmp.ge.s32.totalorder %s39, 2
      %s41 = scalar_select %p40, 0, %s39
      %s42 = ssub.s32 %s29, %s41
      %s43 = ssub.s32 %s30, %s37
      %s44 = sor.u32 %s42, %s43
      %p45 = scmp.eq.s32.totalorder %s44, 0
      %s47 = sadd.s32 %s46, 1
      %s48 = scalar_select %p45, %s46, %s47
      %p51 = pneg %p45
      %p52 = scmp.eq.s32.totalorder %s22, 1
      %p53 = por %p51, %p52
      %p54 = scmp.ne.s32.totalorder %s46, %s49
      %p55 = scmp.eq.s32.totalorder %s22, 0
      %p56 = por %p54, %p55
      %p57 = scmp.ne.s32.totalorder %s46, %s49
      %p58 = scmp.eq.s32.totalorder %s27, 1
      %p59 = por %p57, %p58
      %p60 = scmp.ne.s32.totalorder %s49, %s50
      %p61 = scmp.eq.s32.totalorder %s27, 0
      %p62 = por %p60, %p61
      %p63 = scmp.ne.s32.totalorder %s49, %s50
      %p64 = scmp.eq.s32.totalorder %s28, 1
      %p65 = por %p63, %p64
      %p67 = scmp.ne.s32.totalorder %s50, %s66
      %p68 = scmp.eq.s32.totalorder %s28, 0
      %p69 = por %p67, %p68
      %s70 = sadd.s32 %s30, 1
      %s71 = sadd.s32 %s37, 1
      %s72 = ssub.s32 %s29, %s41
      %s73 = ssub.s32 %s70, %s71
      %s74 = sor.u32 %s72, %s73
      %p75 = scmp.eq.s32.totalorder %s74, 0
      %s77 = sadd.s32 %s76, 1
      %s78 = scalar_select %p75, %s76, %s77
      %p81 = pneg %p75
      %p82 = scmp.eq.s32.totalorder %s22, 1
      %p83 = por %p81, %p82
      %p84 = scmp.ne.s32.totalorder %s76, %s79
      %p85 = scmp.eq.s32.totalorder %s22, 0
      %p86 = por %p84, %p85
      %p87 = scmp.ne.s32.totalorder %s76, %s79
      %p88 = scmp.eq.s32.totalorder %s27, 1
      %p89 = por %p87, %p88
      %p90 = scmp.ne.s32.totalorder %s79, %s80
      %p91 = scmp.eq.s32.totalorder %s27, 0
      %p92 = por %p90, %p91
      %p93 = scmp.ne.s32.totalorder %s79, %s80
      %p94 = scmp.eq.s32.totalorder %s28, 1
      %p95 = por %p93, %p94
      %p97 = scmp.ne.s32.totalorder %s80, %s96
      %p98 = scmp.eq.s32.totalorder %s28, 0
      %p99 = por %p97, %p98
      %s101 = sadd.s32 %s100, 1
      %p104 = scmp.eq.s32.totalorder %s22, 1
      %p105 = scmp.ne.s32.totalorder %s100, %s102
      %p106 = scmp.eq.s32.totalorder %s22, 0
      %p107 = por %p105, %p106
      %p108 = scmp.ne.s32.totalorder %s100, %s102
      %p109 = scmp.eq.s32.totalorder %s27, 1
      %p110 = por %p108, %p109
      %p111 = scmp.ne.s32.totalorder %s102, %s103
      %p112 = scmp.eq.s32.totalorder %s27, 0
      %p113 = por %p111, %p112
      %p114 = scmp.ne.s32.totalorder %s102, %s103
      %p115 = scmp.eq.s32.totalorder %s28, 1
      %p116 = por %p114, %p115
      %p118 = scmp.ne.s32.totalorder %s103, %s117
      %p119 = scmp.eq.s32.totalorder %s28, 0
      %p120 = por %p118, %p119
      %s122 = sadd.s32 %s121, 1
      %p125 = scmp.eq.s32.totalorder %s22, 1
      %p126 = scmp.ne.s32.totalorder %s121, %s123
      %p127 = scmp.eq.s32.totalorder %s22, 0
      %p128 = por %p126, %p127
      %p129 = scmp.ne.s32.totalorder %s121, %s123
      %p130 = scmp.eq.s32.totalorder %s27, 1
      %p131 = por %p129, %p130
      %p132 = scmp.ne.s32.totalorder %s123, %s124
      %p133 = scmp.eq.s32.totalorder %s27, 0
      %p134 = por %p132, %p133
      %p135 = scmp.ne.s32.totalorder %s123, %s124
      %p136 = scmp.eq.s32.totalorder %s28, 1
      %p137 = por %p135, %p136
      %p139 = scmp.ne.s32.totalorder %s124, %s138
      %p140 = scmp.eq.s32.totalorder %s28, 0
      %p141 = por %p139, %p140
      %s143 = sadd.s32 %s142, 1
      %p146 = scmp.eq.s32.totalorder %s22, 1
      %p147 = scmp.ne.s32.totalorder %s142, %s144
      %p148 = scmp.eq.s32.totalorder %s22, 0
      %p149 = por %p147, %p148
      %p150 = scmp.ne.s32.totalorder %s142, %s144
      %p151 = scmp.eq.s32.totalorder %s27, 1
      %p152 = por %p150, %p151
      %p153 = scmp.ne.s32.totalorder %s144, %s145
      %p154 = scmp.eq.s32.totalorder %s27, 0
      %p155 = por %p153, %p154
      %p156 = scmp.ne.s32.totalorder %s144, %s145
      %p157 = scmp.eq.s32.totalorder %s28, 1
      %p158 = por %p156, %p157
      %p160 = scmp.ne.s32.totalorder %s145, %s159
      %p161 = scmp.eq.s32.totalorder %s28, 0
      %p162 = por %p160, %p161
      %s164 = sadd.s32 %s163, 1
      %p167 = scmp.eq.s32.totalorder %s22, 1
      %p168 = scmp.ne.s32.totalorder %s163, %s165
      %p169 = scmp.eq.s32.totalorder %s22, 0
      %p170 = por %p168, %p169
      %p171 = scmp.ne.s32.totalorder %s163, %s165
      %p172 = scmp.eq.s32.totalorder %s27, 1
      %p173 = por %p171, %p172
      %p174 = scmp.ne.s32.totalorder %s165, %s166
      %p175 = scmp.eq.s32.totalorder %s27, 0
      %p176 = por %p174, %p175
      %p177 = scmp.ne.s32.totalorder %s165, %s166
      %p178 = scmp.eq.s32.totalorder %s28, 1
      %p179 = por %p177, %p178
      %p181 = scmp.ne.s32.totalorder %s166, %s180
      %p182 = scmp.eq.s32.totalorder %s28, 0
      %p183 = por %p181, %p182
      %s184 = ssub.s32 %s29, %s41
      %s185 = ssub.s32 %s30, %s37
      %s186 = sor.u32 %s184, %s185
      %p187 = scmp.eq.s32.totalorder %s186, 0
      %s189 = sadd.s32 %s188, 1
      %s190 = scalar_select %p187, %s188, %s189
      %p193 = pneg %p187
      %p194 = scmp.eq.s32.totalorder %s22, 1
      %p195 = por %p193, %p194
      %p196 = scmp.ne.s32.totalorder %s188, %s191
      %p197 = scmp.eq.s32.totalorder %s22, 0
      %p198 = por %p196, %p197
      %p199 = scmp.ne.s32.totalorder %s188, %s191
      %p200 = scmp.eq.s32.totalorder %s27, 1
      %p201 = por %p199, %p200
      %p202 = scmp.ne.s32.totalorder %s191, %s192
      %p203 = scmp.eq.s32.totalorder %s27, 0
      %p204 = por %p202, %p203
      %p205 = scmp.ne.s32.totalorder %s191, %s192
      %p206 = scmp.eq.s32.totalorder %s28, 1
      %p207 = por %p205, %p206
      %p209 = scmp.ne.s32.totalorder %s192, %s208
      %p210 = scmp.eq.s32.totalorder %s28, 0
      %p211 = por %p209, %p210
      %p212 = scmp.le.s32.totalorder 1, %s22
      %p213 = scmp.lt.s32.totalorder %s22, 3
      %p214 = pnand %p212, %p213
      %p215 = pneg %p214
      // Predicated region
      $region9: #{tpu_custom_call.1} parent=5 // pred_check
        _
      $region10: #{tpu_custom_call.1} parent=5 // pred_check_branch
        %217 = sbr.rel (%p214) target = $region12
      $region11: #{tpu_custom_call.1} parent=5 // pred_region
        %s218 = ssub.s32 %s22, 1
        // Predicated region
        $region13: #{tpu_custom_call.1} parent=11 // pred_check
          %p219 = pneg %p113
        $region14: #{tpu_custom_call.1} parent=11 // pred_check_branch
          %221 = sbr.rel (%p219) target = $region16
        $region15: #{tpu_custom_call.1} parent=11 // pred_region
          %223 = vsyncadd [#allocation6], 0
          %s224 = sshll.u32 %s2, 4
          %s225 = int_to_ptr.hbm [resolvable:$true] %s224
          %s226 = sshll.u32 [#allocation7], 4
          %s227 = int_to_ptr.vmem [resolvable:$true] %s226
          %232 = dma.hbm_to_vmem [thread:$0]  %s225, 5120, %s227, [#allocation6], 320, 320, 20
        $region16: #{tpu_custom_call.1} parent=11 // pred_fallthru
          _
        // Predicated region
        $region17: #{tpu_custom_call.1} parent=11 // pred_check
          %p233 = pneg %p134
        $region18: #{tpu_custom_call.1} parent=11 // pred_check_branch
          %235 = sbr.rel (%p233) target = $region20
        $region19: #{tpu_custom_call.1} parent=11 // pred_region
          _
        $region20: #{tpu_custom_call.1} parent=11 // pred_fallthru
          _
        // Predicated region
        $region21: #{tpu_custom_call.1} parent=11 // pred_check
          %p236 = pneg %p155
        $region22: #{tpu_custom_call.1} parent=11 // pred_check_branch
          %238 = sbr.rel (%p236) target = $region24
        $region23: #{tpu_custom_call.1} parent=11 // pred_region
          %240 = vsyncadd [#allocation9], 0
          %s241 = sshll.u32 %s4, 4
          %s242 = int_to_ptr.hbm [resolvable:$true] %s241
          %s243 = sshll.u32 [#allocation8], 4
          %s244 = int_to_ptr.vmem [resolvable:$true] %s243
          %249 = dma.hbm_to_vmem [thread:$0]  %s242, 5120, %s244, [#allocation9], 320, 320, 20
        $region24: #{tpu_custom_call.1} parent=11 // pred_fallthru
          _
        // Predicated region
        $region25: #{tpu_custom_call.1} parent=11 // pred_check
          %p250 = pneg %p176
        $region26: #{tpu_custom_call.1} parent=11 // pred_check_branch
          %252 = sbr.rel (%p250) target = $region28
        $region27: #{tpu_custom_call.1} parent=11 // pred_region
          _
        $region28: #{tpu_custom_call.1} parent=11 // pred_fallthru
          _
      $region12: #{tpu_custom_call.1} parent=5 // pred_fallthru
        _
      %p253 = scmp.lt.s32.totalorder %s22, 2
      // Predicated region
      $region29: #{tpu_custom_call.1} parent=5 // pred_check
        %p254 = pneg %p253
      $region30: #{tpu_custom_call.1} parent=5 // pred_check_branch
        %256 = sbr.rel (%p254) target = $region32
      $region31: #{tpu_custom_call.1} parent=5 // pred_region
        // Predicated region
        $region33: #{tpu_custom_call.1} parent=31 // pred_check
          %p257 = pneg %p56
        $region34: #{tpu_custom_call.1} parent=31 // pred_check_branch
          %259 = sbr.rel (%p257) target = $region36
        $region35: #{tpu_custom_call.1} parent=31 // pred_region
          %s260 = sand.u32 %s46, 1
          %s261 = scalar_lea.sflag [#allocation3], %s260
          %s262 = sand.u32 %s46, 1
          %s263 = smul.addr %s262, 8
          %s264 = scalar_lea.vmem [#allocation2], %s263
          %s265 = smul.u32 2, %s30
          %267 = vsyncadd %s261, 0
          %s268 = smul.addr %s29, 4
          %s269 = sadd.s32 %s265, %s268
          %s270 = smul.addr %s269, 4
          %s271 = scalar_lea.hbm %s0, %s270
          %s272 = sshll.u32 %s271, 4
          %s273 = int_to_ptr.hbm [resolvable:$true] %s272
          %s274 = sshll.u32 %s264, 4
          %s275 = int_to_ptr.vmem [resolvable:$true] %s274
          %280 = dma.hbm_to_vmem [thread:$0]  %s273, 128, %s275, %s261, 64, 64, 4
        $region36: #{tpu_custom_call.1} parent=31 // pred_fallthru
          _
        // Predicated region
        $region37: #{tpu_custom_call.1} parent=31 // pred_check
          %p281 = pneg %p86
        $region38: #{tpu_custom_call.1} parent=31 // pred_check_branch
          %283 = sbr.rel (%p281) target = $region40
        $region39: #{tpu_custom_call.1} parent=31 // pred_region
          %s284 = sand.u32 %s22, 1
          %s285 = scalar_lea.sflag [#allocation6], %s284
          %s286 = sand.u32 %s76, 1
          %s287 = smul.addr %s286, 8
          %s288 = scalar_lea.vmem [#allocation5], %s287
          %s289 = sadd.s32 %s30, 1
          %s290 = smul.u32 2, %s289
          %292 = vsyncadd %s285, 0
          %s293 = smul.addr %s29, 4
          %s294 = sadd.s32 %s290, %s293
          %s295 = smul.addr %s294, 4
          %s296 = scalar_lea.hbm %s1, %s295
          %s297 = sshll.u32 %s296, 4
          %s298 = int_to_ptr.hbm [resolvable:$true] %s297
          %s299 = sshll.u32 %s288, 4
          %s300 = int_to_ptr.vmem [resolvable:$true] %s299
          %305 = dma.hbm_to_vmem [thread:$0]  %s298, 128, %s300, %s285, 64, 64, 4
        $region40: #{tpu_custom_call.1} parent=31 // pred_fallthru
          _
      $region32: #{tpu_custom_call.1} parent=5 // pred_fallthru
        _
      %p306 = scmp.le.s32.totalorder 1, %s22
      %p307 = scmp.lt.s32.totalorder %s22, 3
      %p308 = pnand %p306, %p307
      %p309 = pneg %p308
      // Predicated region
      $region41: #{tpu_custom_call.1} parent=5 // pred_check
        _
      $region42: #{tpu_custom_call.1} parent=5 // pred_check_branch
        %311 = sbr.rel (%p308) target = $region44
      $region43: #{tpu_custom_call.1} parent=5 // pred_region
        %s312 = ssub.s32 %s22, 1
        %s313 = sand.u32 %s49, 1
        %s314 = scalar_lea.sflag [#allocation3], %s313
        %s315 = sand.u32 %s49, 1
        %s316 = smul.addr %s315, 8
        %s317 = scalar_lea.vmem [#allocation2], %s316
        // Predicated region
        $region45: #{tpu_custom_call.1} parent=43 // pred_check
          %p318 = pneg %p62
        $region46: #{tpu_custom_call.1} parent=43 // pred_check_branch
          %320 = sbr.rel (%p318) target = $region48
        $region47: #{tpu_custom_call.1} parent=43 // pred_region
          %322 = dma.done %s314, 128
        $region48: #{tpu_custom_call.1} parent=43 // pred_fallthru
          _
        %s323 = sand.u32 %s27, 1
        %s324 = scalar_lea.sflag [#allocation6], %s323
        %s325 = sand.u32 %s79, 1
        %s326 = smul.addr %s325, 8
        %s327 = scalar_lea.vmem [#allocation5], %s326
        // Predicated region
        $region49: #{tpu_custom_call.1} parent=43 // pred_check
          %p328 = pneg %p92
        $region50: #{tpu_custom_call.1} parent=43 // pred_check_branch
          %330 = sbr.rel (%p328) target = $region52
        $region51: #{tpu_custom_call.1} parent=43 // pred_region
          %332 = dma.done %s324, 128
        $region52: #{tpu_custom_call.1} parent=43 // pred_fallthru
          _
        // Predicated region
        $region53: #{tpu_custom_call.1} parent=43 // pred_check
          %p333 = pneg %p113
        $region54: #{tpu_custom_call.1} parent=43 // pred_check_branch
          %335 = sbr.rel (%p333) target = $region56
        $region55: #{tpu_custom_call.1} parent=43 // pred_region
          %337 = dma.done [#allocation6], 5120
        $region56: #{tpu_custom_call.1} parent=43 // pred_fallthru
          _
        // Predicated region
        $region57: #{tpu_custom_call.1} parent=43 // pred_check
          %p338 = pneg %p155
        $region58: #{tpu_custom_call.1} parent=43 // pred_check_branch
          %340 = sbr.rel (%p338) target = $region60
        $region59: #{tpu_custom_call.1} parent=43 // pred_region
          %342 = dma.done [#allocation9], 5120
        $region60: #{tpu_custom_call.1} parent=43 // pred_fallthru
          _
        %s343 = sand.u32 %s49, 1
        %s344 = scalar_lea.sflag [#allocation3], %s343
        %s345 = sand.u32 %s49, 1
        %s346 = smul.addr %s345, 8
        %s347 = scalar_lea.vmem [#allocation2], %s346
        %p348 = pneg %p62
        %p349 = pneg %p59
        %s350 = sand.u32 %s27, 1
        %s351 = scalar_lea.sflag [#allocation6], %s350
        %s352 = sand.u32 %s79, 1
        %s353 = smul.addr %s352, 8
        %s354 = scalar_lea.vmem [#allocation5], %s353
        %p355 = pneg %p92
        %p356 = pneg %p89
        %p357 = pneg %p113
        %p358 = pneg %p110
        %p359 = pneg %p134
        %p360 = pneg %p131
        %p361 = pneg %p155
        %p362 = pneg %p152
        %p363 = pneg %p176
        %p364 = pneg %p173
        %p365 = pneg %p204
        %p366 = pneg %p201
        %s367 = sand.u32 %s191, 1
        %s368 = scalar_lea.sflag [#allocation4], %s367
        %s369 = sand.u32 %s191, 1
        %s370 = smul.addr %s369, 8
        %s371 = scalar_lea.vmem [#allocation10], %s370
        %s372 = smul.u32 2, %s32
        %s373 = sadd.s32 %s32, 1
        %s374 = smul.u32 2, %s373
        %s375 = smul.u32 2, %s32
        %v376 = vld [vmem:[%s317] sm:$0xf]
        %v377 = vld [vmem:[%s317 + $0x4] sm:$0xf]
        %v378 = vld [vmem:[%s327] sm:$0xf]
        %v379 = vld [vmem:[%s327 + $0x4] sm:$0xf]
        %v382 = vunpack.c.l.b16 %v376
        %v383 = vunpack.c.l.b16 %v377
        %v384 = vpack.c.b16 %v383, %v382
        %v388 = vunpack.c.l.b16 %v378
        %v389 = vunpack.c.l.b16 %v379
        %v390 = vpack.c.b16 %v389, %v388
        %v392 = vld [vmem:[#allocation7] sm:$0xff]
        %v393 = vld [vmem:[#allocation7 + $0x8] sm:$0xff]
        %v394 = vld [vmem:[#allocation7 + $0x10] sm:$0xf]
        %v395 = vld [vmem:[#allocation7 + $0x14] sm:$0xff]
        %v396 = vld [vmem:[#allocation7 + $0x1c] sm:$0xff]
        %v397 = vld [vmem:[#allocation7 + $0x24] sm:$0xf]
        %v398 = vld [vmem:[#allocation7 + $0x28] sm:$0xff]
        %v399 = vld [vmem:[#allocation7 + $0x30] sm:$0xff]
        %v400 = vld [vmem:[#allocation7 + $0x38] sm:$0xf]
        %v401 = vld [vmem:[#allocation7 + $0x3c] sm:$0xff]
        %v402 = vld [vmem:[#allocation7 + $0x44] sm:$0xff]
        %v403 = vld [vmem:[#allocation7 + $0x4c] sm:$0xf]
        %v404 = vld [vmem:[#allocation7 + $0x50] sm:$0xff]
        %v405 = vld [vmem:[#allocation7 + $0x58] sm:$0xff]
        %v406 = vld [vmem:[#allocation7 + $0x60] sm:$0xf]
        %v407 = vld [vmem:[#allocation7 + $0x64] sm:$0xff]
        %v408 = vld [vmem:[#allocation7 + $0x6c] sm:$0xff]
        %v409 = vld [vmem:[#allocation7 + $0x74] sm:$0xf]
        %v410 = vld [vmem:[#allocation7 + $0x78] sm:$0xff]
        %v411 = vld [vmem:[#allocation7 + $0x80] sm:$0xff]
        %v412 = vld [vmem:[#allocation7 + $0x88] sm:$0xf]
        %v413 = vld [vmem:[#allocation7 + $0x8c] sm:$0xff]
        %v414 = vld [vmem:[#allocation7 + $0x94] sm:$0xff]
        %v415 = vld [vmem:[#allocation7 + $0x9c] sm:$0xf]
        %v416 = vld [vmem:[#allocation7 + $0xa0] sm:$0xff]
        %v417 = vld [vmem:[#allocation7 + $0xa8] sm:$0xff]
        %v418 = vld [vmem:[#allocation7 + $0xb0] sm:$0xf]
        %v419 = vld [vmem:[#allocation7 + $0xb4] sm:$0xff]
        %v420 = vld [vmem:[#allocation7 + $0xbc] sm:$0xff]
        %v421 = vld [vmem:[#allocation7 + $0xc4] sm:$0xf]
        %v422 = vld [vmem:[#allocation7 + $0xc8] sm:$0xff]
        %v423 = vld [vmem:[#allocation7 + $0xd0] sm:$0xff]
        %v424 = vld [vmem:[#allocation7 + $0xd8] sm:$0xf]
        %v425 = vld [vmem:[#allocation7 + $0xdc] sm:$0xff]
        %v426 = vld [vmem:[#allocation7 + $0xe4] sm:$0xff]
        %v427 = vld [vmem:[#allocation7 + $0xec] sm:$0xf]
        %v428 = vld [vmem:[#allocation7 + $0xf0] sm:$0xff]
        %v429 = vld [vmem:[#allocation7 + $0xf8] sm:$0xff]
        %v430 = vld [vmem:[#allocation7 + $0x100] sm:$0xf]
        %v431 = vld [vmem:[#allocation7 + $0x104] sm:$0xff]
        %v432 = vld [vmem:[#allocation7 + $0x10c] sm:$0xff]
        %v433 = vld [vmem:[#allocation7 + $0x114] sm:$0xf]
        %v434 = vld [vmem:[#allocation7 + $0x118] sm:$0xff]
        %v435 = vld [vmem:[#allocation7 + $0x120] sm:$0xff]
        %v436 = vld [vmem:[#allocation7 + $0x128] sm:$0xf]
        %v437 = vld [vmem:[#allocation7 + $0x12c] sm:$0xff]
        %v438 = vld [vmem:[#allocation7 + $0x134] sm:$0xff]
        %v439 = vld [vmem:[#allocation7 + $0x13c] sm:$0xf]
        %v488 = vunpack.c.l.b16 %v392
        %v489 = vunpack.c.h.b16 %v392
        %v490 = vunpack.c.l.b16 %v393
        %v491 = vunpack.c.h.b16 %v393
        %v492 = vunpack.c.l.b16 %v394
        %v493 = vunpack.c.l.b16 %v395
        %v494 = vunpack.c.h.b16 %v395
        %v495 = vunpack.c.l.b16 %v396
        %v496 = vunpack.c.h.b16 %v396
        %v497 = vunpack.c.l.b16 %v397
        %v498 = vunpack.c.l.b16 %v398
        %v499 = vunpack.c.h.b16 %v398
        %v500 = vunpack.c.l.b16 %v399
        %v501 = vunpack.c.h.b16 %v399
        %v502 = vunpack.c.l.b16 %v400
        %v503 = vunpack.c.l.b16 %v401
        %v504 = vunpack.c.h.b16 %v401
        %v505 = vunpack.c.l.b16 %v402
        %v506 = vunpack.c.h.b16 %v402
        %v507 = vunpack.c.l.b16 %v403
        %v508 = vunpack.c.l.b16 %v404
        %v509 = vunpack.c.h.b16 %v404
        %v510 = vunpack.c.l.b16 %v405
        %v511 = vunpack.c.h.b16 %v405
        %v512 = vunpack.c.l.b16 %v406
        %v513 = vunpack.c.l.b16 %v407
        %v514 = vunpack.c.h.b16 %v407
        %v515 = vunpack.c.l.b16 %v408
        %v516 = vunpack.c.h.b16 %v408
        %v517 = vunpack.c.l.b16 %v409
        %v518 = vunpack.c.l.b16 %v410
        %v519 = vunpack.c.h.b16 %v410
        %v520 = vunpack.c.l.b16 %v411
        %v521 = vunpack.c.h.b16 %v411
        %v522 = vunpack.c.l.b16 %v412
        %v523 = vunpack.c.l.b16 %v413
        %v524 = vunpack.c.h.b16 %v413
        %v525 = vunpack.c.l.b16 %v414
        %v526 = vunpack.c.h.b16 %v414
        %v527 = vunpack.c.l.b16 %v415
        %v528 = vunpack.c.l.b16 %v416
        %v529 = vunpack.c.h.b16 %v416
        %v530 = vunpack.c.l.b16 %v417
        %v531 = vunpack.c.h.b16 %v417
        %v532 = vunpack.c.l.b16 %v418
        %v533 = vunpack.c.l.b16 %v419
        %v534 = vunpack.c.h.b16 %v419
        %v535 = vunpack.c.l.b16 %v420
        %v536 = vunpack.c.h.b16 %v420
        %v537 = vunpack.c.l.b16 %v421
        %v538 = vunpack.c.l.b16 %v422
        %v539 = vunpack.c.h.b16 %v422
        %v540 = vunpack.c.l.b16 %v423
        %v541 = vunpack.c.h.b16 %v423
        %v542 = vunpack.c.l.b16 %v424
        %v543 = vunpack.c.l.b16 %v425
        %v544 = vunpack.c.h.b16 %v425
        %v545 = vunpack.c.l.b16 %v426
        %v546 = vunpack.c.h.b16 %v426
        %v547 = vunpack.c.l.b16 %v427
        %v548 = vunpack.c.l.b16 %v428
        %v549 = vunpack.c.h.b16 %v428
        %v550 = vunpack.c.l.b16 %v429
        %v551 = vunpack.c.h.b16 %v429
        %v552 = vunpack.c.l.b16 %v430
        %v553 = vunpack.c.l.b16 %v431
        %v554 = vunpack.c.h.b16 %v431
        %v555 = vunpack.c.l.b16 %v432
        %v556 = vunpack.c.h.b16 %v432
        %v557 = vunpack.c.l.b16 %v433
        %v558 = vunpack.c.l.b16 %v434
        %v559 = vunpack.c.h.b16 %v434
        %v560 = vunpack.c.l.b16 %v435
        %v561 = vunpack.c.h.b16 %v435
        %v562 = vunpack.c.l.b16 %v436
        %v563 = vunpack.c.l.b16 %v437
        %v564 = vunpack.c.h.b16 %v437
        %v565 = vunpack.c.l.b16 %v438
        %v566 = vunpack.c.h.b16 %v438
        %v567 = vunpack.c.l.b16 %v439
        %v568 = vpack.c.b16 %v493, %v488
        %v569 = vpack.c.b16 %v494, %v489
        %v570 = vpack.c.b16 %v495, %v490
        %v571 = vpack.c.b16 %v496, %v491
        %v572 = vpack.c.b16 %v497, %v492
        %v573 = vpack.c.b16 %v503, %v498
        %v574 = vpack.c.b16 %v504, %v499
        %v575 = vpack.c.b16 %v505, %v500
        %v576 = vpack.c.b16 %v506, %v501
        %v577 = vpack.c.b16 %v507, %v502
        %v578 = vpack.c.b16 %v513, %v508
        %v579 = vpack.c.b16 %v514, %v509
        %v580 = vpack.c.b16 %v515, %v510
        %v581 = vpack.c.b16 %v516, %v511
        %v582 = vpack.c.b16 %v517, %v512
        %v583 = vpack.c.b16 %v523, %v518
        %v584 = vpack.c.b16 %v524, %v519
        %v585 = vpack.c.b16 %v525, %v520
        %v586 = vpack.c.b16 %v526, %v521
        %v587 = vpack.c.b16 %v527, %v522
        %v588 = vpack.c.b16 %v533, %v528
        %v589 = vpack.c.b16 %v534, %v529
        %v590 = vpack.c.b16 %v535, %v530
        %v591 = vpack.c.b16 %v536, %v531
        %v592 = vpack.c.b16 %v537, %v532
        %v593 = vpack.c.b16 %v543, %v538
        %v594 = vpack.c.b16 %v544, %v539
        %v595 = vpack.c.b16 %v545, %v540
        %v596 = vpack.c.b16 %v546, %v541
        %v597 = vpack.c.b16 %v547, %v542
        %v598 = vpack.c.b16 %v553, %v548
        %v599 = vpack.c.b16 %v554, %v549
        %v600 = vpack.c.b16 %v555, %v550
        %v601 = vpack.c.b16 %v556, %v551
        %v602 = vpack.c.b16 %v557, %v552
        %v603 = vpack.c.b16 %v563, %v558
        %v604 = vpack.c.b16 %v564, %v559
        %v605 = vpack.c.b16 %v565, %v560
        %v606 = vpack.c.b16 %v566, %v561
        %v607 = vpack.c.b16 %v567, %v562
        %648 = vmatpush.bf16.msra.mxu0 %v603
        %649 = vmatpush.bf16.msra.mxu0 %v598
        %650 = vmatpush.bf16.msra.mxu0 %v593
        %651 = vmatpush.bf16.msra.mxu0 %v588
        %652 = vmatpush.bf16.msra.mxu0 %v583
        %653 = vmatpush.bf16.msra.mxu0 %v578
        %654 = vmatpush.bf16.msra.mxu0 %v573
        %655 = vmatpush.bf16.msra.mxu0 %v568
        %656 = vmatmul.bf16.gmra.mxu0 %v384
        %v657 = vpop.f32.mrf.mxu0
        %v658 = vadd.f32 0.0, %v657
        %v659 = vpop.f32.mrf.mxu0
        %v660 = vadd.f32 0.0, %v659
        %661 = vmatmul.bf16.gmra.mxu0 %v390
        %v662 = vpop.f32.mrf.mxu0
        %v663 = vadd.f32 0.0, %v662
        %v664 = vpop.f32.mrf.mxu0
        %v665 = vadd.f32 0.0, %v664
        %666 = vdwg.mxu0
        %667 = vmatpush.bf16.msra.mxu0 %v604
        %668 = vmatpush.bf16.msra.mxu0 %v599
        %669 = vmatpush.bf16.msra.mxu0 %v594
        %670 = vmatpush.bf16.msra.mxu0 %v589
        %671 = vmatpush.bf16.msra.mxu0 %v584
        %672 = vmatpush.bf16.msra.mxu0 %v579
        %673 = vmatpush.bf16.msra.mxu0 %v574
        %674 = vmatpush.bf16.msra.mxu0 %v569
        %675 = vmatmul.bf16.gmra.mxu0 %v384
        %v676 = vpop.f32.mrf.mxu0
        %v677 = vadd.f32 0.0, %v676
        %v678 = vpop.f32.mrf.mxu0
        %v679 = vadd.f32 0.0, %v678
        %680 = vmatmul.bf16.gmra.mxu0 %v390
        %v681 = vpop.f32.mrf.mxu0
        %v682 = vadd.f32 0.0, %v681
        %v683 = vpop.f32.mrf.mxu0
        %v684 = vadd.f32 0.0, %v683
        %685 = vdwg.mxu0
        %686 = vmatpush.bf16.msra.mxu0 %v605
        %687 = vmatpush.bf16.msra.mxu0 %v600
        %688 = vmatpush.bf16.msra.mxu0 %v595
        %689 = vmatpush.bf16.msra.mxu0 %v590
        %690 = vmatpush.bf16.msra.mxu0 %v585
        %691 = vmatpush.bf16.msra.mxu0 %v580
        %692 = vmatpush.bf16.msra.mxu0 %v575
        %693 = vmatpush.bf16.msra.mxu0 %v570
        %694 = vmatmul.bf16.gmra.mxu0 %v384
        %v695 = vpop.f32.mrf.mxu0
        %v696 = vadd.f32 0.0, %v695
        %v697 = vpop.f32.mrf.mxu0
        %v698 = vadd.f32 0.0, %v697
        %699 = vmatmul.bf16.gmra.mxu0 %v390
        %v700 = vpop.f32.mrf.mxu0
        %v701 = vadd.f32 0.0, %v700
        %v702 = vpop.f32.mrf.mxu0
        %v703 = vadd.f32 0.0, %v702
        %704 = vdwg.mxu0
        %705 = vmatpush.bf16.msra.mxu0 %v606
        %706 = vmatpush.bf16.msra.mxu0 %v601
        %707 = vmatpush.bf16.msra.mxu0 %v596
        %708 = vmatpush.bf16.msra.mxu0 %v591
        %709 = vmatpush.bf16.msra.mxu0 %v586
        %710 = vmatpush.bf16.msra.mxu0 %v581
        %711 = vmatpush.bf16.msra.mxu0 %v576
        %712 = vmatpush.bf16.msra.mxu0 %v571
        %713 = vmatmul.bf16.gmra.mxu0 %v384
        %v714 = vpop.f32.mrf.mxu0
        %v715 = vadd.f32 0.0, %v714
        %v716 = vpop.f32.mrf.mxu0
        %v717 = vadd.f32 0.0, %v716
        %718 = vmatmul.bf16.gmra.mxu0 %v390
        %v719 = vpop.f32.mrf.mxu0
        %v720 = vadd.f32 0.0, %v719
        %v721 = vpop.f32.mrf.mxu0
        %v722 = vadd.f32 0.0, %v721
        %723 = vdwg.mxu0
        %724 = vmatpush.bf16.msra.mxu0 %v607
        %725 = vmatpush.bf16.msra.mxu0 %v602
        %726 = vmatpush.bf16.msra.mxu0 %v597
        %727 = vmatpush.bf16.msra.mxu0 %v592
        %728 = vmatpush.bf16.msra.mxu0 %v587
        %729 = vmatpush.bf16.msra.mxu0 %v582
        %730 = vmatpush.bf16.msra.mxu0 %v577
        %731 = vmatpush.bf16.msra.mxu0 %v572
        %732 = vmatmul.bf16.gmra.mxu0 %v384
        %v733 = vpop.f32.mrf.mxu0
        %v734 = vadd.f32 0.0, %v733
        %v735 = vpop.f32.mrf.mxu0
        %v736 = vadd.f32 0.0, %v735
        %737 = vmatmul.bf16.gmra.mxu0 %v390
        %v738 = vpop.f32.mrf.mxu0
        %v739 = vadd.f32 0.0, %v738
        %v740 = vpop.f32.mrf.mxu0
        %v741 = vadd.f32 0.0, %v740
        %742 = vdwg.mxu0
        %v743 = vld [vmem:[%s3] sm:$0x1]
        %v745 = vperm.slane %v743, 0
        %v747 = vadd.f32 %v658, %v745
        %v748 = vadd.f32 %v660, %v745
        %v749 = vadd.f32 %v663, %v745
        %v750 = vadd.f32 %v665, %v745
        %v751 = vrot.slane %v677, 1
        %v752 = vrot.slane %v679, 1
        %v753 = vrot.slane %v682, 1
        %v754 = vrot.slane %v684, 1
        %v755 = vlaneseq
        %v756 = vshrl.u32 %v755, 7
        %vm757 = vcmp.lt.s32.totalorder %v756, 7
        %v758 = vsel %vm757, %v753, %v754
        %v759 = vsel %vm757, %v752, %v753
        %v760 = vsel %vm757, %v751, %v752
        %v761 = vsel %vm757, %v754, %v751
        %v762 = vadd.f32 %v747, %v760
        %v763 = vadd.f32 %v748, %v759
        %v764 = vadd.f32 %v749, %v758
        %v765 = vadd.f32 %v750, %v761
        %v766 = vrot.slane %v696, 2
        %v767 = vrot.slane %v698, 2
        %v768 = vrot.slane %v701, 2
        %v769 = vrot.slane %v703, 2
        %vm770 = vcmp.lt.s32.totalorder %v756, 6
        %v771 = vsel %vm770, %v768, %v769
        %v772 = vsel %vm770, %v767, %v768
        %v773 = vsel %vm770, %v766, %v767
        %v774 = vsel %vm770, %v769, %v766
        %v775 = vadd.f32 %v762, %v773
        %v776 = vadd.f32 %v763, %v772
        %v777 = vadd.f32 %v764, %v771
        %v778 = vadd.f32 %v765, %v774
        %v779 = vrot.slane %v715, 3
        %v780 = vrot.slane %v717, 3
        %v781 = vrot.slane %v720, 3
        %v782 = vrot.slane %v722, 3
        %vm783 = vcmp.lt.s32.totalorder %v756, 5
        %v784 = vsel %vm783, %v781, %v782
        %v785 = vsel %vm783, %v780, %v781
        %v786 = vsel %vm783, %v779, %v780
        %v787 = vsel %vm783, %v782, %v779
        %v788 = vadd.f32 %v775, %v786
        %v789 = vadd.f32 %v776, %v785
        %v790 = vadd.f32 %v777, %v784
        %v791 = vadd.f32 %v778, %v787
        %v792 = vrot.slane %v734, 4
        %v793 = vrot.slane %v736, 4
        %v794 = vrot.slane %v739, 4
        %v795 = vrot.slane %v741, 4
        %vm796 = vcmp.lt.s32.totalorder %v756, 4
        %v797 = vsel %vm796, %v794, %v795
        %v798 = vsel %vm796, %v793, %v794
        %v799 = vsel %vm796, %v792, %v793
        %v800 = vsel %vm796, %v795, %v792
        %v801 = vadd.f32 %v788, %v799
        %v802 = vadd.f32 %v789, %v798
        %v803 = vadd.f32 %v790, %v797
        %v804 = vadd.f32 %v791, %v800
        %vm805 = vcmp.gt.f32.partialorder %v801, 0.0
        %vm806 = vcmp.gt.f32.partialorder %v802, 0.0
        %vm807 = vcmp.gt.f32.partialorder %v803, 0.0
        %vm808 = vcmp.gt.f32.partialorder %v804, 0.0
        %v809 = vmul.f32 %v801, 0.1
        %v810 = vmul.f32 %v802, 0.1
        %v811 = vmul.f32 %v803, 0.1
        %v812 = vmul.f32 %v804, 0.1
        %v813 = vsel %vm805, %v801, %v809
        %v814 = vsel %vm806, %v802, %v810
        %v815 = vsel %vm807, %v803, %v811
        %v816 = vsel %vm808, %v804, %v812
        %s817 = smul.u32 %s32, 16
        %s818 = ssub.s32 %s817, 2
        %v819 = vadd.s32 %v756, 8
        %v820 = vadd.s32 %v756, 16
        %v821 = vadd.s32 %v756, 24
        %v822 = vstv %s818
        %v823 = vadd.s32 %v822, %v756
        %v824 = vadd.s32 %v822, %v819
        %v825 = vadd.s32 %v822, %v820
        %v826 = vadd.s32 %v822, %v821
        %vm827 = vcmp.ge.s32.totalorder %v823, 0
        %vm828 = vcmp.ge.s32.totalorder %v824, 0
        %vm829 = vcmp.ge.s32.totalorder %v825, 0
        %vm830 = vcmp.ge.s32.totalorder %v826, 0
        %vm831 = vcmp.lt.s32.totalorder %v823, 16
        %vm832 = vcmp.lt.s32.totalorder %v824, 16
        %vm833 = vcmp.lt.s32.totalorder %v825, 16
        %vm834 = vcmp.lt.s32.totalorder %v826, 16
        %vm835 = vmand %vm827, %vm831
        %vm836 = vmand %vm828, %vm832
        %vm837 = vmand %vm829, %vm833
        %vm838 = vmand %vm830, %vm834
        %v839 = vsel %vm835, 1, 0
        %v840 = vsel %vm836, 1, 0
        %v841 = vsel %vm837, 1, 0
        %v842 = vsel %vm838, 1, 0
        %vm843 = vcmp.eq.s32.totalorder %v839, 1
        %vm844 = vcmp.eq.s32.totalorder %v840, 1
        %vm845 = vcmp.eq.s32.totalorder %v841, 1
        %vm846 = vcmp.eq.s32.totalorder %v842, 1
        %v847 = vsel %vm843, %v813, 0.0
        %v848 = vsel %vm844, %v814, 0.0
        %v849 = vsel %vm845, %v815, 0.0
        %v850 = vsel %vm846, %v816, 0.0
        %v851 = vpack.c.bf16 %v848, %v847
        %v852 = vpack.c.bf16 %v850, %v849
        %v853 = vld [vmem:[#allocation8] sm:$0xff]
        %v854 = vld [vmem:[#allocation8 + $0x8] sm:$0xff]
        %v855 = vld [vmem:[#allocation8 + $0x10] sm:$0xf]
        %v856 = vld [vmem:[#allocation8 + $0x14] sm:$0xff]
        %v857 = vld [vmem:[#allocation8 + $0x1c] sm:$0xff]
        %v858 = vld [vmem:[#allocation8 + $0x24] sm:$0xf]
        %v859 = vld [vmem:[#allocation8 + $0x28] sm:$0xff]
        %v860 = vld [vmem:[#allocation8 + $0x30] sm:$0xff]
        %v861 = vld [vmem:[#allocation8 + $0x38] sm:$0xf]
        %v862 = vld [vmem:[#allocation8 + $0x3c] sm:$0xff]
        %v863 = vld [vmem:[#allocation8 + $0x44] sm:$0xff]
        %v864 = vld [vmem:[#allocation8 + $0x4c] sm:$0xf]
        %v865 = vld [vmem:[#allocation8 + $0x50] sm:$0xff]
        %v866 = vld [vmem:[#allocation8 + $0x58] sm:$0xff]
        %v867 = vld [vmem:[#allocation8 + $0x60] sm:$0xf]
        %v868 = vld [vmem:[#allocation8 + $0x64] sm:$0xff]
        %v869 = vld [vmem:[#allocation8 + $0x6c] sm:$0xff]
        %v870 = vld [vmem:[#allocation8 + $0x74] sm:$0xf]
        %v871 = vld [vmem:[#allocation8 + $0x78] sm:$0xff]
        %v872 = vld [vmem:[#allocation8 + $0x80] sm:$0xff]
        %v873 = vld [vmem:[#allocation8 + $0x88] sm:$0xf]
        %v874 = vld [vmem:[#allocation8 + $0x8c] sm:$0xff]
        %v875 = vld [vmem:[#allocation8 + $0x94] sm:$0xff]
        %v876 = vld [vmem:[#allocation8 + $0x9c] sm:$0xf]
        %v877 = vld [vmem:[#allocation8 + $0xa0] sm:$0xff]
        %v878 = vld [vmem:[#allocation8 + $0xa8] sm:$0xff]
        %v879 = vld [vmem:[#allocation8 + $0xb0] sm:$0xf]
        %v880 = vld [vmem:[#allocation8 + $0xb4] sm:$0xff]
        %v881 = vld [vmem:[#allocation8 + $0xbc] sm:$0xff]
        %v882 = vld [vmem:[#allocation8 + $0xc4] sm:$0xf]
        %v883 = vld [vmem:[#allocation8 + $0xc8] sm:$0xff]
        %v884 = vld [vmem:[#allocation8 + $0xd0] sm:$0xff]
        %v885 = vld [vmem:[#allocation8 + $0xd8] sm:$0xf]
        %v886 = vld [vmem:[#allocation8 + $0xdc] sm:$0xff]
        %v887 = vld [vmem:[#allocation8 + $0xe4] sm:$0xff]
        %v888 = vld [vmem:[#allocation8 + $0xec] sm:$0xf]
        %v889 = vld [vmem:[#allocation8 + $0xf0] sm:$0xff]
        %v890 = vld [vmem:[#allocation8 + $0xf8] sm:$0xff]
        %v891 = vld [vmem:[#allocation8 + $0x100] sm:$0xf]
        %v892 = vld [vmem:[#allocation8 + $0x104] sm:$0xff]
        %v893 = vld [vmem:[#allocation8 + $0x10c] sm:$0xff]
        %v894 = vld [vmem:[#allocation8 + $0x114] sm:$0xf]
        %v895 = vld [vmem:[#allocation8 + $0x118] sm:$0xff]
        %v896 = vld [vmem:[#allocation8 + $0x120] sm:$0xff]
        %v897 = vld [vmem:[#allocation8 + $0x128] sm:$0xf]
        %v898 = vld [vmem:[#allocation8 + $0x12c] sm:$0xff]
        %v899 = vld [vmem:[#allocation8 + $0x134] sm:$0xff]
        %v900 = vld [vmem:[#allocation8 + $0x13c] sm:$0xf]
        %v949 = vunpack.c.l.b16 %v853
        %v950 = vunpack.c.h.b16 %v853
        %v951 = vunpack.c.l.b16 %v854
        %v952 = vunpack.c.h.b16 %v854
        %v953 = vunpack.c.l.b16 %v855
        %v954 = vunpack.c.l.b16 %v856
        %v955 = vunpack.c.h.b16 %v856
        %v956 = vunpack.c.l.b16 %v857
        %v957 = vunpack.c.h.b16 %v857
        %v958 = vunpack.c.l.b16 %v858
        %v959 = vunpack.c.l.b16 %v859
        %v960 = vunpack.c.h.b16 %v859
        %v961 = vunpack.c.l.b16 %v860
        %v962 = vunpack.c.h.b16 %v860
        %v963 = vunpack.c.l.b16 %v861
        %v964 = vunpack.c.l.b16 %v862
        %v965 = vunpack.c.h.b16 %v862
        %v966 = vunpack.c.l.b16 %v863
        %v967 = vunpack.c.h.b16 %v863
        %v968 = vunpack.c.l.b16 %v864
        %v969 = vunpack.c.l.b16 %v865
        %v970 = vunpack.c.h.b16 %v865
        %v971 = vunpack.c.l.b16 %v866
        %v972 = vunpack.c.h.b16 %v866
        %v973 = vunpack.c.l.b16 %v867
        %v974 = vunpack.c.l.b16 %v868
        %v975 = vunpack.c.h.b16 %v868
        %v976 = vunpack.c.l.b16 %v869
        %v977 = vunpack.c.h.b16 %v869
        %v978 = vunpack.c.l.b16 %v870
        %v979 = vunpack.c.l.b16 %v871
        %v980 = vunpack.c.h.b16 %v871
        %v981 = vunpack.c.l.b16 %v872
        %v982 = vunpack.c.h.b16 %v872
        %v983 = vunpack.c.l.b16 %v873
        %v984 = vunpack.c.l.b16 %v874
        %v985 = vunpack.c.h.b16 %v874
        %v986 = vunpack.c.l.b16 %v875
        %v987 = vunpack.c.h.b16 %v875
        %v988 = vunpack.c.l.b16 %v876
        %v989 = vunpack.c.l.b16 %v877
        %v990 = vunpack.c.h.b16 %v877
        %v991 = vunpack.c.l.b16 %v878
        %v992 = vunpack.c.h.b16 %v878
        %v993 = vunpack.c.l.b16 %v879
        %v994 = vunpack.c.l.b16 %v880
        %v995 = vunpack.c.h.b16 %v880
        %v996 = vunpack.c.l.b16 %v881
        %v997 = vunpack.c.h.b16 %v881
        %v998 = vunpack.c.l.b16 %v882
        %v999 = vunpack.c.l.b16 %v883
        %v1000 = vunpack.c.h.b16 %v883
        %v1001 = vunpack.c.l.b16 %v884
        %v1002 = vunpack.c.h.b16 %v884
        %v1003 = vunpack.c.l.b16 %v885
        %v1004 = vunpack.c.l.b16 %v886
        %v1005 = vunpack.c.h.b16 %v886
        %v1006 = vunpack.c.l.b16 %v887
        %v1007 = vunpack.c.h.b16 %v887
        %v1008 = vunpack.c.l.b16 %v888
        %v1009 = vunpack.c.l.b16 %v889
        %v1010 = vunpack.c.h.b16 %v889
        %v1011 = vunpack.c.l.b16 %v890
        %v1012 = vunpack.c.h.b16 %v890
        %v1013 = vunpack.c.l.b16 %v891
        %v1014 = vunpack.c.l.b16 %v892
        %v1015 = vunpack.c.h.b16 %v892
        %v1016 = vunpack.c.l.b16 %v893
        %v1017 = vunpack.c.h.b16 %v893
        %v1018 = vunpack.c.l.b16 %v894
        %v1019 = vunpack.c.l.b16 %v895
        %v1020 = vunpack.c.h.b16 %v895
        %v1021 = vunpack.c.l.b16 %v896
        %v1022 = vunpack.c.h.b16 %v896
        %v1023 = vunpack.c.l.b16 %v897
        %v1024 = vunpack.c.l.b16 %v898
        %v1025 = vunpack.c.h.b16 %v898
        %v1026 = vunpack.c.l.b16 %v899
        %v1027 = vunpack.c.h.b16 %v899
        %v1028 = vunpack.c.l.b16 %v900
        %v1029 = vpack.c.b16 %v954, %v949
        %v1030 = vpack.c.b16 %v955, %v950
        %v1031 = vpack.c.b16 %v956, %v951
        %v1032 = vpack.c.b16 %v957, %v952
        %v1033 = vpack.c.b16 %v958, %v953
        %v1034 = vpack.c.b16 %v964, %v959
        %v1035 = vpack.c.b16 %v965, %v960
        %v1036 = vpack.c.b16 %v966, %v961
        %v1037 = vpack.c.b16 %v967, %v962
        %v1038 = vpack.c.b16 %v968, %v963
        %v1039 = vpack.c.b16 %v974, %v969
        %v1040 = vpack.c.b16 %v975, %v970
        %v1041 = vpack.c.b16 %v976, %v971
        %v1042 = vpack.c.b16 %v977, %v972
        %v1043 = vpack.c.b16 %v978, %v973
        %v1044 = vpack.c.b16 %v984, %v979
        %v1045 = vpack.c.b16 %v985, %v980
        %v1046 = vpack.c.b16 %v986, %v981
        %v1047 = vpack.c.b16 %v987, %v982
        %v1048 = vpack.c.b16 %v988, %v983
        %v1049 = vpack.c.b16 %v994, %v989
        %v1050 = vpack.c.b16 %v995, %v990
        %v1051 = vpack.c.b16 %v996, %v991
        %v1052 = vpack.c.b16 %v997, %v992
        %v1053 = vpack.c.b16 %v998, %v993
        %v1054 = vpack.c.b16 %v1004, %v999
        %v1055 = vpack.c.b16 %v1005, %v1000
        %v1056 = vpack.c.b16 %v1006, %v1001
        %v1057 = vpack.c.b16 %v1007, %v1002
        %v1058 = vpack.c.b16 %v1008, %v1003
        %v1059 = vpack.c.b16 %v1014, %v1009
        %v1060 = vpack.c.b16 %v1015, %v1010
        %v1061 = vpack.c.b16 %v1016, %v1011
        %v1062 = vpack.c.b16 %v1017, %v1012
        %v1063 = vpack.c.b16 %v1018, %v1013
        %v1064 = vpack.c.b16 %v1024, %v1019
        %v1065 = vpack.c.b16 %v1025, %v1020
        %v1066 = vpack.c.b16 %v1026, %v1021
        %v1067 = vpack.c.b16 %v1027, %v1022
        %v1068 = vpack.c.b16 %v1028, %v1023
        %1109 = vmatpush.bf16.msra.mxu0 %v1064
        %1110 = vmatpush.bf16.msra.mxu0 %v1059
        %1111 = vmatpush.bf16.msra.mxu0 %v1054
        %1112 = vmatpush.bf16.msra.mxu0 %v1049
        %1113 = vmatpush.bf16.msra.mxu0 %v1044
        %1114 = vmatpush.bf16.msra.mxu0 %v1039
        %1115 = vmatpush.bf16.msra.mxu0 %v1034
        %1116 = vmatpush.bf16.msra.mxu0 %v1029
        %1117 = vmatmul.bf16.gmra.mxu0 %v851
        %v1118 = vpop.f32.mrf.mxu0
        %v1119 = vadd.f32 0.0, %v1118
        %v1120 = vpop.f32.mrf.mxu0
        %v1121 = vadd.f32 0.0, %v1120
        %1122 = vmatmul.bf16.gmra.mxu0 %v852
        %v1123 = vpop.f32.mrf.mxu0
        %v1124 = vpop.f32.mrf.mxu0
        %1125 = vdwg.mxu0
        %1126 = vmatpush.bf16.msra.mxu0 %v1065
        %1127 = vmatpush.bf16.msra.mxu0 %v1060
        %1128 = vmatpush.bf16.msra.mxu0 %v1055
        %1129 = vmatpush.bf16.msra.mxu0 %v1050
        %1130 = vmatpush.bf16.msra.mxu0 %v1045
        %1131 = vmatpush.bf16.msra.mxu0 %v1040
        %1132 = vmatpush.bf16.msra.mxu0 %v1035
        %1133 = vmatpush.bf16.msra.mxu0 %v1030
        %1134 = vmatmul.bf16.gmra.mxu0 %v851
        %v1135 = vpop.f32.mrf.mxu0
        %v1136 = vadd.f32 0.0, %v1135
        %v1137 = vpop.f32.mrf.mxu0
        %v1138 = vadd.f32 0.0, %v1137
        %1139 = vmatmul.bf16.gmra.mxu0 %v852
        %v1140 = vpop.f32.mrf.mxu0
        %v1141 = vadd.f32 0.0, %v1140
        %v1142 = vpop.f32.mrf.mxu0
        %1143 = vdwg.mxu0
        %1144 = vmatpush.bf16.msra.mxu0 %v1066
        %1145 = vmatpush.bf16.msra.mxu0 %v1061
        %1146 = vmatpush.bf16.msra.mxu0 %v1056
        %1147 = vmatpush.bf16.msra.mxu0 %v1051
        %1148 = vmatpush.bf16.msra.mxu0 %v1046
        %1149 = vmatpush.bf16.msra.mxu0 %v1041
        %1150 = vmatpush.bf16.msra.mxu0 %v1036
        %1151 = vmatpush.bf16.msra.mxu0 %v1031
        %1152 = vmatmul.bf16.gmra.mxu0 %v851
        %v1153 = vpop.f32.mrf.mxu0
        %v1154 = vadd.f32 0.0, %v1153
        %v1155 = vpop.f32.mrf.mxu0
        %v1156 = vadd.f32 0.0, %v1155
        %1157 = vmatmul.bf16.gmra.mxu0 %v852
        %v1158 = vpop.f32.mrf.mxu0
        %v1159 = vadd.f32 0.0, %v1158
        %v1160 = vpop.f32.mrf.mxu0
        %1161 = vdwg.mxu0
        %1162 = vmatpush.bf16.msra.mxu0 %v1067
        %1163 = vmatpush.bf16.msra.mxu0 %v1062
        %1164 = vmatpush.bf16.msra.mxu0 %v1057
        %1165 = vmatpush.bf16.msra.mxu0 %v1052
        %1166 = vmatpush.bf16.msra.mxu0 %v1047
        %1167 = vmatpush.bf16.msra.mxu0 %v1042
        %1168 = vmatpush.bf16.msra.mxu0 %v1037
        %1169 = vmatpush.bf16.msra.mxu0 %v1032
        %1170 = vmatmul.bf16.gmra.mxu0 %v851
        %v1171 = vpop.f32.mrf.mxu0
        %v1172 = vadd.f32 0.0, %v1171
        %v1173 = vpop.f32.mrf.mxu0
        %v1174 = vadd.f32 0.0, %v1173
        %1175 = vmatmul.bf16.gmra.mxu0 %v852
        %v1176 = vpop.f32.mrf.mxu0
        %v1177 = vadd.f32 0.0, %v1176
        %v1178 = vpop.f32.mrf.mxu0
        %1179 = vdwg.mxu0
        %1180 = vmatpush.bf16.msra.mxu0 %v1068
        %1181 = vmatpush.bf16.msra.mxu0 %v1063
        %1182 = vmatpush.bf16.msra.mxu0 %v1058
        %1183 = vmatpush.bf16.msra.mxu0 %v1053
        %1184 = vmatpush.bf16.msra.mxu0 %v1048
        %1185 = vmatpush.bf16.msra.mxu0 %v1043
        %1186 = vmatpush.bf16.msra.mxu0 %v1038
        %1187 = vmatpush.bf16.msra.mxu0 %v1033
        %1188 = vmatmul.bf16.gmra.mxu0 %v851
        %v1189 = vpop.f32.mrf.mxu0
        %v1190 = vadd.f32 0.0, %v1189
        %v1191 = vpop.f32.mrf.mxu0
        %v1192 = vadd.f32 0.0, %v1191
        %1193 = vmatmul.bf16.gmra.mxu0 %v852
        %v1194 = vpop.f32.mrf.mxu0
        %v1195 = vadd.f32 0.0, %v1194
        %v1196 = vpop.f32.mrf.mxu0
        %1197 = vdwg.mxu0
        %v1198 = vld [vmem:[%s5] sm:$0x1]
        %v1200 = vperm.slane %v1198, 0
        %v1202 = vadd.f32 %v1119, %v1200
        %v1203 = vadd.f32 %v1121, %v1200
        %v1204 = vrot.slane %v1136, 1
        %v1205 = vrot.slane %v1138, 1
        %v1206 = vrot.slane %v1141, 1
        %v1207 = vsel %vm757, %v1205, %v1206
        %v1208 = vsel %vm757, %v1204, %v1205
        %v1209 = vadd.f32 %v1202, %v1208
        %v1210 = vadd.f32 %v1203, %v1207
        %v1211 = vrot.slane %v1154, 2
        %v1212 = vrot.slane %v1156, 2
        %v1213 = vrot.slane %v1159, 2
        %v1214 = vsel %vm770, %v1212, %v1213
        %v1215 = vsel %vm770, %v1211, %v1212
        %v1216 = vadd.f32 %v1209, %v1215
        %v1217 = vadd.f32 %v1210, %v1214
        %v1218 = vrot.slane %v1172, 3
        %v1219 = vrot.slane %v1174, 3
        %v1220 = vrot.slane %v1177, 3
        %v1221 = vsel %vm783, %v1219, %v1220
        %v1222 = vsel %vm783, %v1218, %v1219
        %v1223 = vadd.f32 %v1216, %v1222
        %v1224 = vadd.f32 %v1217, %v1221
        %v1225 = vunpack.c.l.bf16 %v384
        %v1226 = vunpack.c.h.bf16 %v384
        %v1227 = vunpack.c.l.bf16 %v390
        %v1228 = vadd.f32 %v1190, %v1225
        %v1229 = vadd.f32 %v1192, %v1226
        %v1230 = vadd.f32 %v1195, %v1227
        %v1231 = vrot.slane %v1228, 4
        %v1232 = vrot.slane %v1229, 4
        %v1233 = vrot.slane %v1230, 4
        %v1234 = vsel %vm796, %v1232, %v1233
        %v1235 = vsel %vm796, %v1231, %v1232
        %v1236 = vadd.f32 %v1223, %v1235
        %v1237 = vadd.f32 %v1224, %v1234
        %v1238 = vpack.c.bf16 %v1236, %v1236
        %v1239 = vpack.c.bf16 %v1237, %v1237
        %1240 = vst [vmem:[%s371] sm:$0xf] %v1238
        %1241 = vst [vmem:[%s371 + $0x4] sm:$0xf] %v1239
        %s1242 = sand.u32 %s191, 1
        %s1243 = scalar_lea.sflag [#allocation4], %s1242
        %s1244 = sand.u32 %s191, 1
        %s1245 = smul.addr %s1244, 8
        %s1246 = scalar_lea.vmem [#allocation10], %s1245
        // Predicated region
        $region61: #{tpu_custom_call.1} parent=43 // pred_check
          %p1247 = pneg %p201
        $region62: #{tpu_custom_call.1} parent=43 // pred_check_branch
          %1249 = sbr.rel (%p1247) target = $region64
        $region63: #{tpu_custom_call.1} parent=43 // pred_region
          %s1250 = smul.u32 2, %s32
          %1252 = vsyncadd %s1243, 0
          %s1253 = smul.addr %s31, 2
          %s1254 = sadd.s32 %s1250, %s1253
          %s1255 = smul.addr %s1254, 4
          %s1256 = scalar_lea.hbm %s6, %s1255
          %s1257 = sshll.u32 %s1246, 4
          %s1258 = int_to_ptr.vmem [resolvable:$true] %s1257
          %s1259 = sshll.u32 %s1256, 4
          %s1260 = int_to_ptr.hbm [resolvable:$true] %s1259
          %1265 = dma.vmem_to_hbm [thread:$0]  %s1258, 128, %s1260, %s1243, 64, 64, 4
        $region64: #{tpu_custom_call.1} parent=43 // pred_fallthru
          _
      $region44: #{tpu_custom_call.1} parent=5 // pred_fallthru
        _
      %p1266 = scmp.le.s32.totalorder 2, %s22
      // Predicated region
      $region65: #{tpu_custom_call.1} parent=5 // pred_check
        %p1267 = pneg %p1266
      $region66: #{tpu_custom_call.1} parent=5 // pred_check_branch
        %1269 = sbr.rel (%p1267) target = $region68
      $region67: #{tpu_custom_call.1} parent=5 // pred_region
        %s1270 = ssub.s32 %s22, 2
        // Predicated region
        $region69: #{tpu_custom_call.1} parent=67 // pred_check
          %p1271 = pneg %p207
        $region70: #{tpu_custom_call.1} parent=67 // pred_check_branch
          %1273 = sbr.rel (%p1271) target = $region72
        $region71: #{tpu_custom_call.1} parent=67 // pred_region
          %s1274 = sand.u32 %s192, 1
          %s1275 = scalar_lea.sflag [#allocation4], %s1274
          %s1276 = sand.u32 %s192, 1
          %s1277 = smul.addr %s1276, 8
          %s1278 = scalar_lea.vmem [#allocation10], %s1277
          %1280 = dma.done %s1275, 128
        $region72: #{tpu_custom_call.1} parent=67 // pred_fallthru
          _
      $region68: #{tpu_custom_call.1} parent=5 // pred_fallthru
        _
    $region6: #{tpu_custom_call.1} parent=1 // loop_footer
      %s26 = sadd.s32 1, %s22
    $region7: #{tpu_custom_call.1} parent=1 // loop_footer_branch
      %21 = sbr.rel target = $region3
    $region8: #{tpu_custom_call.1} parent=1 // loop_exit
      _
    %1281 = vsyncpa [#allocation3], 1
    %s1282 = scalar_lea.sflag [#allocation3], 1
    %1283 = vsyncpa %s1282, 1
    %1284 = vsyncpa [#allocation6], 1
    %s1285 = scalar_lea.sflag [#allocation6], 1
    %1286 = vsyncpa %s1285, 1
    %1287 = vsyncpa [#allocation9], 1
    %1288 = vsyncpa [#allocation4], 1
    %s1289 = scalar_lea.sflag [#allocation4], 1
    %1290 = vsyncpa %s1289, 1

</llo_original>
